<compile_context>
chip_gen: v6e
topology: v6e:2x2x1
jax: 0.10.0
libtpu: 0.0.40
codegen_flags: <defaults>
</compile_context>

<pallas_src>
import numpy as np
import jax
import jax.numpy as jnp
from jax.experimental import pallas as pl
from jax.experimental.pallas import tpu as pltpu

EPS = 1e-9
MAX_PAD = 4  # largest drawn kernel size is 9 -> pad 4


def _gaussian_kernel1d(kernel_size, sigma):
    # Matches torchvision.transforms.functional._get_gaussian_kernel1d
    ksize_half = (kernel_size - 1) * 0.5
    xs = np.linspace(-ksize_half, ksize_half, kernel_size)
    pdf = np.exp(-0.5 * (xs / sigma) ** 2)
    w = pdf / pdf.sum()
    return [float(v) for v in w]


def _draw_terms(seed):
    """Host-side (kernel_size, sigma) draws, mirroring np.random.* in the
    original module. Returns [(tap_weights, term_weight), ...]."""
    rng = np.random.RandomState(seed)
    terms = [([1.0], 1.0)]  # base (unblurred) Charbonnier term
    for _ in range(3):
        k = int(rng.choice([3, 5, 9]))
        sigma = float(rng.uniform(2.0, 4.0))
        terms.append((_gaussian_kernel1d(k, sigma), 1.0 / 3.0))
    return terms


def _make_fused_kernel(terms, H, W, eps, inv_n):
    """Kernel over one (bc_tile, H+2P, W+2P) block of the reflect-padded
    difference d = x - y.  Computes the weighted, N-normalized partial sum of
    ALL Charbonnier terms for this block and accumulates it into the scalar
    SMEM output (resident across the grid)."""
    P = MAX_PAD

    def kernel(dp_ref, o_ref):
        @pl.when(pl.program_id(0) == 0)
        def _():
            o_ref[0, 0] = jnp.float32(0.0)

        block_sum = None
        for w1d, term_w in terms:
            K = len(w1d)
            pad = K // 2
            off = P - pad  # window offset inside the max-padded block
            # Vertical pass: each tap is a static-offset read from the VMEM ref
            # (keeps live ranges short, lets the scheduler interleave vld/FMA).
            acc = w1d[0] * dp_ref[:, off:off + H, :]
            for i in range(1, K):
                acc = acc + w1d[i] * dp_ref[:, off + i:off + i + H, :]
            # Horizontal pass (lane-axis taps).
            blurred = w1d[0] * acc[:, :, off:off + W]
            for j in range(1, K):
                blurred = blurred + w1d[j] * acc[:, :, off + j:off + j + W]
            # Charbonnier partial sum, pre-weighted and pre-normalized so the
            # accumulated output IS the final loss.
            contrib = (term_w * inv_n) * jnp.sum(jnp.sqrt(blurred * blurred + eps))
            block_sum = contrib if block_sum is None else block_sum + contrib

        o_ref[0, 0] += block_sum

    return kernel


def unl2_loss(x, y, eps=EPS, seed=0, bc_tile=None):
    """Forward pass. kernel_size / sigma are drawn host-side with a fixed seed
    (deterministic stand-in for np.random.* in the PyTorch module)."""
    B, C, H, W = x.shape
    assert H > MAX_PAD and W > MAX_PAD, "reflect padding (pad<=4) requires H, W > 4"
    BC = B * C
    P = MAX_PAD
    Hp, Wp = H + 2 * P, W + 2 * P

    terms = _draw_terms(seed)

    # blur(x) - blur(y) == blur(x - y): form the difference once and reflect-pad
    # it ONCE at the maximum pad; every term slices the window it needs
    # (reflect-pad-by-p is exactly the centre slice of reflect-pad-by-4).
    d = (x - y).astype(jnp.float32).reshape(BC, H, W)
    dp = jnp.pad(d, ((0, 0), (P, P), (P, P)), mode="reflect")

    # Tile along B*C so (block + double buffer) stays comfortably inside scoped
    # VMEM on every generation (v7x only has 64 MiB physical VMEM).
    if bc_tile is None:
        budget = 4 << 20  # ~4 MiB per input block
        bc_tile = max(1, min(BC, budget // (Hp * Wp * 4)))
        while BC % bc_tile:
            bc_tile -= 1
    assert BC % bc_tile == 0, "bc_tile must divide B*C"
    num_blocks = BC // bc_tile
    # TODO(synk): for very large H*W (bc_tile=1 block >> VMEM budget) add H-tiling
    # with halo windows; for small W (<128) and large B*C a (H, W, B*C) lane-dense
    # relayout would further avoid masked loads / lane rotates.

    kernel = _make_fused_kernel(terms, H, W, eps, 1.0 / float(BC * H * W))

    out = pl.pallas_call(
        kernel,
        out_shape=jax.ShapeDtypeStruct((1, 1), jnp.float32),
        grid=(num_blocks,),
        in_specs=[pl.BlockSpec((bc_tile, Hp, Wp), lambda i: (i, 0, 0))],
        out_specs=pl.BlockSpec((1, 1), lambda i: (0, 0),
                               memory_space=pltpu.MemorySpace.SMEM),
        compiler_params=pltpu.CompilerParams(
            # scalar accumulator carried across the grid -> reduction axis
            dimension_semantics=("arbitrary",)),
    )(dp)
    return out[0, 0]


# ---- pure-JAX reference (original un-fused formulation) for correctness ----
def _ref_unl2(x, y, terms, eps=EPS):
    B, C, H, W = x.shape

    def blur(a, w1d):
        K = len(w1d)
        pad = K // 2
        ar = a.reshape(B * C, H, W)
        if pad > 0:
            ar = jnp.pad(ar, ((0, 0), (pad, pad), (pad, pad)), mode="reflect")
        acc = sum(w1d[i] * ar[:, i:i + H, :] for i in range(K))
        return sum(w1d[j] * acc[:, :, j:j + W] for j in range(K))

    loss = 0.0
    for w1d, tw in terms:
        diff = blur(x, w1d) - blur(y, w1d)
        loss = loss + tw * jnp.mean(jnp.sqrt(diff * diff + eps))
    return loss


if __name__ == "__main__":
    key = jax.random.PRNGKey(0)
    kx, ky = jax.random.split(key)
    x = jax.random.normal(kx, (2, 4, 16, 16), dtype=jnp.float32)
    y = jax.random.normal(ky, (2, 4, 16, 16), dtype=jnp.float32)

    # bc_tile=2 -> grid of 4 blocks over B*C=8, exercising the pipelined grid
    # and the cross-step SMEM accumulation.
    loss = unl2_loss(x, y, seed=0, bc_tile=2)
    jax.block_until_ready(loss)

    ref = _ref_unl2(x, y, _draw_terms(0))
    np.testing.assert_allclose(np.asarray(loss), np.asarray(ref), rtol=1e-5, atol=1e-6)

    print("KERNEL_OK")
</pallas_src>

<mosaic_0001>
module attributes {stable_mosaic.version = 11 : i64} {
  func.func @kernel(%arg0: i32, %arg1: memref<2x24x24xf32, #tpu.memory_space<vmem>>, %arg2: memref<1x1xf32, #tpu.memory_space<smem>>) attributes {dimension_semantics = [#tpu.dimension_semantics<arbitrary>], iteration_bounds = array<i64: 4>, scalar_prefetch = 0 : i64, scratch_operands = 0 : i64, tpu.core_type = #tpu.core_type<tc>, window_params = [{transform_indices = @transform_0, window_bounds = array<i64: 2, 24, 24>}, {transform_indices = @transform_1, window_bounds = array<i64: 1, 1>}]} {
    %c0_i32 = arith.constant 0 : i32
    %0 = arith.cmpi eq, %arg0, %c0_i32 : i32
    %1 = arith.extui %0 : i1 to i32
    %c0_i32_0 = arith.constant 0 : i32
    %2 = arith.cmpi ne, %1, %c0_i32_0 : i32
    scf.if %2 {
      %cst_70 = arith.constant 0.000000e+00 : f32
      %c0_71 = arith.constant 0 : index
      %c0_72 = arith.constant 0 : index
      %133 = memref.load %arg2[%c0_71, %c0_72] : memref<1x1xf32, #tpu.memory_space<smem>>
      memref.store %cst_70, %arg2[%c0_71, %c0_72] : memref<1x1xf32, #tpu.memory_space<smem>>
    } else {
    }
    %c0 = arith.constant 0 : index
    %c4 = arith.constant 4 : index
    %c0_1 = arith.constant 0 : index
    %3 = vector.load %arg1[%c0, %c4, %c0_1] : memref<2x24x24xf32, #tpu.memory_space<vmem>>, vector<2x16x24xf32>
    %cst = arith.constant 1.000000e+00 : f32
    %4 = vector.broadcast %cst : f32 to vector<2x16x24xf32>
    %5 = arith.mulf %4, %3 : vector<2x16x24xf32>
    %6 = vector.extract_strided_slice %5 {offsets = [0, 0, 4], sizes = [2, 16, 16], strides = [1, 1, 1]} : vector<2x16x24xf32> to vector<2x16x16xf32>
    %cst_2 = arith.constant 1.000000e+00 : f32
    %7 = vector.broadcast %cst_2 : f32 to vector<2x16x16xf32>
    %8 = arith.mulf %7, %6 : vector<2x16x16xf32>
    %9 = arith.mulf %8, %8 : vector<2x16x16xf32>
    %cst_3 = arith.constant 9.99999971E-10 : f32
    %10 = vector.broadcast %cst_3 : f32 to vector<2x16x16xf32>
    %11 = arith.addf %9, %10 : vector<2x16x16xf32>
    %12 = math.sqrt %11 : vector<2x16x16xf32>
    %13 = vector.shape_cast %12 : vector<2x16x16xf32> to vector<1x2x16x16xf32>
    %cst_4 = arith.constant dense<0.000000e+00> : vector<1xf32>
    %14 = vector.multi_reduction <add>, %13, %cst_4 [1, 2, 3] : vector<1x2x16x16xf32> to vector<1xf32>
    %15 = vector.shape_cast %14 : vector<1xf32> to vector<1x1x1x1xf32>
    %16 = vector.extract %15[0, 0, 0, 0] : f32 from vector<1x1x1x1xf32>
    %cst_5 = arith.constant 4.8828125E-4 : f32
    %17 = arith.mulf %cst_5, %16 : f32
    %c0_6 = arith.constant 0 : index
    %c3 = arith.constant 3 : index
    %c0_7 = arith.constant 0 : index
    %18 = vector.load %arg1[%c0_6, %c3, %c0_7] : memref<2x24x24xf32, #tpu.memory_space<vmem>>, vector<2x16x24xf32>
    %cst_8 = arith.constant 0.327814937 : f32
    %19 = vector.broadcast %cst_8 : f32 to vector<2x16x24xf32>
    %20 = arith.mulf %19, %18 : vector<2x16x24xf32>
    %c0_9 = arith.constant 0 : index
    %c4_10 = arith.constant 4 : index
    %c0_11 = arith.constant 0 : index
    %21 = vector.load %arg1[%c0_9, %c4_10, %c0_11] : memref<2x24x24xf32, #tpu.memory_space<vmem>>, vector<2x16x24xf32>
    %cst_12 = arith.constant 0.344370127 : f32
    %22 = vector.broadcast %cst_12 : f32 to vector<2x16x24xf32>
    %23 = arith.mulf %22, %21 : vector<2x16x24xf32>
    %24 = arith.addf %20, %23 : vector<2x16x24xf32>
    %c0_13 = arith.constant 0 : index
    %c5 = arith.constant 5 : index
    %c0_14 = arith.constant 0 : index
    %25 = vector.load %arg1[%c0_13, %c5, %c0_14] : memref<2x24x24xf32, #tpu.memory_space<vmem>>, vector<2x16x24xf32>
    %cst_15 = arith.constant 0.327814937 : f32
    %26 = vector.broadcast %cst_15 : f32 to vector<2x16x24xf32>
    %27 = arith.mulf %26, %25 : vector<2x16x24xf32>
    %28 = arith.addf %24, %27 : vector<2x16x24xf32>
    %29 = vector.extract_strided_slice %28 {offsets = [0, 0, 3], sizes = [2, 16, 16], strides = [1, 1, 1]} : vector<2x16x24xf32> to vector<2x16x16xf32>
    %cst_16 = arith.constant 0.327814937 : f32
    %30 = vector.broadcast %cst_16 : f32 to vector<2x16x16xf32>
    %31 = arith.mulf %30, %29 : vector<2x16x16xf32>
    %32 = vector.extract_strided_slice %28 {offsets = [0, 0, 4], sizes = [2, 16, 16], strides = [1, 1, 1]} : vector<2x16x24xf32> to vector<2x16x16xf32>
    %cst_17 = arith.constant 0.344370127 : f32
    %33 = vector.broadcast %cst_17 : f32 to vector<2x16x16xf32>
    %34 = arith.mulf %33, %32 : vector<2x16x16xf32>
    %35 = arith.addf %31, %34 : vector<2x16x16xf32>
    %36 = vector.extract_strided_slice %28 {offsets = [0, 0, 5], sizes = [2, 16, 16], strides = [1, 1, 1]} : vector<2x16x24xf32> to vector<2x16x16xf32>
    %cst_18 = arith.constant 0.327814937 : f32
    %37 = vector.broadcast %cst_18 : f32 to vector<2x16x16xf32>
    %38 = arith.mulf %37, %36 : vector<2x16x16xf32>
    %39 = arith.addf %35, %38 : vector<2x16x16xf32>
    %40 = arith.mulf %39, %39 : vector<2x16x16xf32>
    %cst_19 = arith.constant 9.99999971E-10 : f32
    %41 = vector.broadcast %cst_19 : f32 to vector<2x16x16xf32>
    %42 = arith.addf %40, %41 : vector<2x16x16xf32>
    %43 = math.sqrt %42 : vector<2x16x16xf32>
    %44 = vector.shape_cast %43 : vector<2x16x16xf32> to vector<1x2x16x16xf32>
    %cst_20 = arith.constant dense<0.000000e+00> : vector<1xf32>
    %45 = vector.multi_reduction <add>, %44, %cst_20 [1, 2, 3] : vector<1x2x16x16xf32> to vector<1xf32>
    %46 = vector.shape_cast %45 : vector<1xf32> to vector<1x1x1x1xf32>
    %47 = vector.extract %46[0, 0, 0, 0] : f32 from vector<1x1x1x1xf32>
    %cst_21 = arith.constant 1.62760422E-4 : f32
    %48 = arith.mulf %cst_21, %47 : f32
    %49 = arith.addf %17, %48 : f32
    %c0_22 = arith.constant 0 : index
    %c3_23 = arith.constant 3 : index
    %c0_24 = arith.constant 0 : index
    %50 = vector.load %arg1[%c0_22, %c3_23, %c0_24] : memref<2x24x24xf32, #tpu.memory_space<vmem>>, vector<2x16x24xf32>
    %cst_25 = arith.constant 0.327883542 : f32
    %51 = vector.broadcast %cst_25 : f32 to vector<2x16x24xf32>
    %52 = arith.mulf %51, %50 : vector<2x16x24xf32>
    %c0_26 = arith.constant 0 : index
    %c4_27 = arith.constant 4 : index
    %c0_28 = arith.constant 0 : index
    %53 = vector.load %arg1[%c0_26, %c4_27, %c0_28] : memref<2x24x24xf32, #tpu.memory_space<vmem>>, vector<2x16x24xf32>
    %cst_29 = arith.constant 0.344232887 : f32
    %54 = vector.broadcast %cst_29 : f32 to vector<2x16x24xf32>
    %55 = arith.mulf %54, %53 : vector<2x16x24xf32>
    %56 = arith.addf %52, %55 : vector<2x16x24xf32>
    %c0_30 = arith.constant 0 : index
    %c5_31 = arith.constant 5 : index
    %c0_32 = arith.constant 0 : index
    %57 = vector.load %arg1[%c0_30, %c5_31, %c0_32] : memref<2x24x24xf32, #tpu.memory_space<vmem>>, vector<2x16x24xf32>
    %cst_33 = arith.constant 0.327883542 : f32
    %58 = vector.broadcast %cst_33 : f32 to vector<2x16x24xf32>
    %59 = arith.mulf %58, %57 : vector<2x16x24xf32>
    %60 = arith.addf %56, %59 : vector<2x16x24xf32>
    %61 = vector.extract_strided_slice %60 {offsets = [0, 0, 3], sizes = [2, 16, 16], strides = [1, 1, 1]} : vector<2x16x24xf32> to vector<2x16x16xf32>
    %cst_34 = arith.constant 0.327883542 : f32
    %62 = vector.broadcast %cst_34 : f32 to vector<2x16x16xf32>
    %63 = arith.mulf %62, %61 : vector<2x16x16xf32>
    %64 = vector.extract_strided_slice %60 {offsets = [0, 0, 4], sizes = [2, 16, 16], strides = [1, 1, 1]} : vector<2x16x24xf32> to vector<2x16x16xf32>
    %cst_35 = arith.constant 0.344232887 : f32
    %65 = vector.broadcast %cst_35 : f32 to vector<2x16x16xf32>
    %66 = arith.mulf %65, %64 : vector<2x16x16xf32>
    %67 = arith.addf %63, %66 : vector<2x16x16xf32>
    %68 = vector.extract_strided_slice %60 {offsets = [0, 0, 5], sizes = [2, 16, 16], strides = [1, 1, 1]} : vector<2x16x24xf32> to vector<2x16x16xf32>
    %cst_36 = arith.constant 0.327883542 : f32
    %69 = vector.broadcast %cst_36 : f32 to vector<2x16x16xf32>
    %70 = arith.mulf %69, %68 : vector<2x16x16xf32>
    %71 = arith.addf %67, %70 : vector<2x16x16xf32>
    %72 = arith.mulf %71, %71 : vector<2x16x16xf32>
    %cst_37 = arith.constant 9.99999971E-10 : f32
    %73 = vector.broadcast %cst_37 : f32 to vector<2x16x16xf32>
    %74 = arith.addf %72, %73 : vector<2x16x16xf32>
    %75 = math.sqrt %74 : vector<2x16x16xf32>
    %76 = vector.shape_cast %75 : vector<2x16x16xf32> to vector<1x2x16x16xf32>
    %cst_38 = arith.constant dense<0.000000e+00> : vector<1xf32>
    %77 = vector.multi_reduction <add>, %76, %cst_38 [1, 2, 3] : vector<1x2x16x16xf32> to vector<1xf32>
    %78 = vector.shape_cast %77 : vector<1xf32> to vector<1x1x1x1xf32>
    %79 = vector.extract %78[0, 0, 0, 0] : f32 from vector<1x1x1x1xf32>
    %cst_39 = arith.constant 1.62760422E-4 : f32
    %80 = arith.mulf %cst_39, %79 : f32
    %81 = arith.addf %49, %80 : f32
    %c0_40 = arith.constant 0 : index
    %c2 = arith.constant 2 : index
    %c0_41 = arith.constant 0 : index
    %82 = vector.load %arg1[%c0_40, %c2, %c0_41] : memref<2x24x24xf32, #tpu.memory_space<vmem>>, vector<2x16x24xf32>
    %cst_42 = arith.constant 0.181335896 : f32
    %83 = vector.broadcast %cst_42 : f32 to vector<2x16x24xf32>
    %84 = arith.mulf %83, %82 : vector<2x16x24xf32>
    %c0_43 = arith.constant 0 : index
    %c3_44 = arith.constant 3 : index
    %c0_45 = arith.constant 0 : index
    %85 = vector.load %arg1[%c0_43, %c3_44, %c0_45] : memref<2x24x24xf32, #tpu.memory_space<vmem>>, vector<2x16x24xf32>
    %cst_46 = arith.constant 0.209058538 : f32
    %86 = vector.broadcast %cst_46 : f32 to vector<2x16x24xf32>
    %87 = arith.mulf %86, %85 : vector<2x16x24xf32>
    %88 = arith.addf %84, %87 : vector<2x16x24xf32>
    %c0_47 = arith.constant 0 : index
    %c4_48 = arith.constant 4 : index
    %c0_49 = arith.constant 0 : index
    %89 = vector.load %arg1[%c0_47, %c4_48, %c0_49] : memref<2x24x24xf32, #tpu.memory_space<vmem>>, vector<2x16x24xf32>
    %cst_50 = arith.constant 0.219211131 : f32
    %90 = vector.broadcast %cst_50 : f32 to vector<2x16x24xf32>
    %91 = arith.mulf %90, %89 : vector<2x16x24xf32>
    %92 = arith.addf %88, %91 : vector<2x16x24xf32>
    %c0_51 = arith.constant 0 : index
    %c5_52 = arith.constant 5 : index
    %c0_53 = arith.constant 0 : index
    %93 = vector.load %arg1[%c0_51, %c5_52, %c0_53] : memref<2x24x24xf32, #tpu.memory_space<vmem>>, vector<2x16x24xf32>
    %cst_54 = arith.constant 0.209058538 : f32
    %94 = vector.broadcast %cst_54 : f32 to vector<2x16x24xf32>
    %95 = arith.mulf %94, %93 : vector<2x16x24xf32>
    %96 = arith.addf %92, %95 : vector<2x16x24xf32>
    %c0_55 = arith.constant 0 : index
    %c6 = arith.constant 6 : index
    %c0_56 = arith.constant 0 : index
    %97 = vector.load %arg1[%c0_55, %c6, %c0_56] : memref<2x24x24xf32, #tpu.memory_space<vmem>>, vector<2x16x24xf32>
    %cst_57 = arith.constant 0.181335896 : f32
    %98 = vector.broadcast %cst_57 : f32 to vector<2x16x24xf32>
    %99 = arith.mulf %98, %97 : vector<2x16x24xf32>
    %100 = arith.addf %96, %99 : vector<2x16x24xf32>
    %101 = vector.extract_strided_slice %100 {offsets = [0, 0, 2], sizes = [2, 16, 16], strides = [1, 1, 1]} : vector<2x16x24xf32> to vector<2x16x16xf32>
    %cst_58 = arith.constant 0.181335896 : f32
    %102 = vector.broadcast %cst_58 : f32 to vector<2x16x16xf32>
    %103 = arith.mulf %102, %101 : vector<2x16x16xf32>
    %104 = vector.extract_strided_slice %100 {offsets = [0, 0, 3], sizes = [2, 16, 16], strides = [1, 1, 1]} : vector<2x16x24xf32> to vector<2x16x16xf32>
    %cst_59 = arith.constant 0.209058538 : f32
    %105 = vector.broadcast %cst_59 : f32 to vector<2x16x16xf32>
    %106 = arith.mulf %105, %104 : vector<2x16x16xf32>
    %107 = arith.addf %103, %106 : vector<2x16x16xf32>
    %108 = vector.extract_strided_slice %100 {offsets = [0, 0, 4], sizes = [2, 16, 16], strides = [1, 1, 1]} : vector<2x16x24xf32> to vector<2x16x16xf32>
    %cst_60 = arith.constant 0.219211131 : f32
    %109 = vector.broadcast %cst_60 : f32 to vector<2x16x16xf32>
    %110 = arith.mulf %109, %108 : vector<2x16x16xf32>
    %111 = arith.addf %107, %110 : vector<2x16x16xf32>
    %112 = vector.extract_strided_slice %100 {offsets = [0, 0, 5], sizes = [2, 16, 16], strides = [1, 1, 1]} : vector<2x16x24xf32> to vector<2x16x16xf32>
    %cst_61 = arith.constant 0.209058538 : f32
    %113 = vector.broadcast %cst_61 : f32 to vector<2x16x16xf32>
    %114 = arith.mulf %113, %112 : vector<2x16x16xf32>
    %115 = arith.addf %111, %114 : vector<2x16x16xf32>
    %116 = vector.extract_strided_slice %100 {offsets = [0, 0, 6], sizes = [2, 16, 16], strides = [1, 1, 1]} : vector<2x16x24xf32> to vector<2x16x16xf32>
    %cst_62 = arith.constant 0.181335896 : f32
    %117 = vector.broadcast %cst_62 : f32 to vector<2x16x16xf32>
    %118 = arith.mulf %117, %116 : vector<2x16x16xf32>
    %119 = arith.addf %115, %118 : vector<2x16x16xf32>
    %120 = arith.mulf %119, %119 : vector<2x16x16xf32>
    %cst_63 = arith.constant 9.99999971E-10 : f32
    %121 = vector.broadcast %cst_63 : f32 to vector<2x16x16xf32>
    %122 = arith.addf %120, %121 : vector<2x16x16xf32>
    %123 = math.sqrt %122 : vector<2x16x16xf32>
    %124 = vector.shape_cast %123 : vector<2x16x16xf32> to vector<1x2x16x16xf32>
    %cst_64 = arith.constant dense<0.000000e+00> : vector<1xf32>
    %125 = vector.multi_reduction <add>, %124, %cst_64 [1, 2, 3] : vector<1x2x16x16xf32> to vector<1xf32>
    %126 = vector.shape_cast %125 : vector<1xf32> to vector<1x1x1x1xf32>
    %127 = vector.extract %126[0, 0, 0, 0] : f32 from vector<1x1x1x1xf32>
    %cst_65 = arith.constant 1.62760422E-4 : f32
    %128 = arith.mulf %cst_65, %127 : f32
    %129 = arith.addf %81, %128 : f32
    %c0_66 = arith.constant 0 : index
    %c0_67 = arith.constant 0 : index
    %130 = memref.load %arg2[%c0_66, %c0_67] : memref<1x1xf32, #tpu.memory_space<smem>>
    %131 = arith.addf %130, %129 : f32
    %c0_68 = arith.constant 0 : index
    %c0_69 = arith.constant 0 : index
    %132 = memref.load %arg2[%c0_68, %c0_69] : memref<1x1xf32, #tpu.memory_space<smem>>
    memref.store %131, %arg2[%c0_68, %c0_69] : memref<1x1xf32, #tpu.memory_space<smem>>
    return
  }
  func.func @transform_0(%arg0: i32) -> (i32, i32, i32) {
    %c0_i32 = arith.constant 0 : i32
    %c0_i32_0 = arith.constant 0 : i32
    %c0_i32_1 = arith.constant 0 : i32
    return %arg0, %c0_i32, %c0_i32_0 : i32, i32, i32
  }
  func.func @transform_1(%arg0: i32) -> (i32, i32) {
    %c0_i32 = arith.constant 0 : i32
    %c0_i32_0 = arith.constant 0 : i32
    %c0_i32_1 = arith.constant 0 : i32
    return %c0_i32, %c0_i32_0 : i32, i32
  }
}

</mosaic_0001>

<llo_original>
// kernel: tpu_custom_call.1
$region0: #{tpu_custom_call.1}
  #allocation0 [shape = 'u32[]', space=smem, size = 0x4, offset = 0x4, fixed_abs, tag = 'smem constant byte address 0x4 - core index']
  #allocation1 [shape = 'u32[144,128]{1,0:T(1,128)}', space=vmem, size = 0x12000, scoped, tag = 'internal scratch']
  %s0 = inlined_call_operand.hbm [shape: f32[8,24,24], index: 0, kind: input, shape index: {}]
  %s1 = inlined_call_operand.hbm [shape: f32[1,1], index: 1, kind: output, shape index: {}]
  %s2 = sld [smem:[#allocation0]]
  $region45: #{tpu_custom_call.1} parent=0
    _
  %s4 = ssub.s32 1, %s2
  %s5 = scalar_select 0, %s4, %s2
  $region1: #{tpu_custom_call.1} parent=0
    #allocation2 [shape = 'u8[49152]{0}', space=vmem, size = 0xc000, scoped, tag = 'input window, operand 0']
    #allocation3 [shape = 's32[2]{0}', space=sflag, size = 0x8, scoped, tag = 'scoped memory for tpu_custom_call.1']
    #allocation4 [shape = 's32[2]{0}', space=sflag, size = 0x8, scoped, tag = 'scoped memory for tpu_custom_call.1']
    #allocation5 [shape = 'u8[512]{0}', space=smem, size = 0x200, scoped, tag = 'output window, operand 0, single buffered']
    %6 = vsyncpa [#allocation3], 0
    %s7 = scalar_lea.sflag [#allocation3], 1
    %8 = vsyncpa %s7, 0
    %9 = vsyncpa [#allocation4], 0
    loop: start=0, step=1, limit=6
    $region2: #{tpu_custom_call.1} parent=1 // loop_pre_header
      _
    $region3: #{tpu_custom_call.1} parent=1 // loop_header
      %s11 = sphi 0, %s15
      %p12 = scmp.ge.s32.totalorder %s11, 6
      %s21 = sphi 0, %s23
      %s24 = sphi 0, %s21
      %s25 = sphi 0, %s24
      %s41 = sphi 0, %s25
      %s45 = sphi 0, %s45
      %s47 = sphi 0, %s45
      %s48 = sphi 0, %s47
      %s62 = sphi 0, %s48
    $region4: #{tpu_custom_call.1} parent=1 // loop_header_branch
      %14 = sbr.rel (%p12) target = $region8
    $region5: #{tpu_custom_call.1} parent=1 // loop_body
      %s16 = ssub.s32 %s11, 1
      %s17 = ssub.s32 %s11, 2
      %s18 = sadd.s32 %s11, 1
      %s19 = ssub.s32 %s11, %s18
      %p20 = scmp.eq.s32.totalorder %s19, 0
      %s22 = sadd.s32 %s21, 1
      %s23 = scalar_select %p20, %s21, %s22
      %p26 = pneg %p20
      %p27 = scmp.eq.s32.totalorder %s11, 3
      %p28 = por %p26, %p27
      %p29 = scmp.ne.s32.totalorder %s21, %s24
      %p30 = scmp.eq.s32.totalorder %s11, 0
      %p31 = por %p29, %p30
      %p32 = scmp.ne.s32.totalorder %s21, %s24
      %p33 = scmp.eq.s32.totalorder %s16, 3
      %p34 = por %p32, %p33
      %p35 = scmp.ne.s32.totalorder %s24, %s25
      %p36 = scmp.eq.s32.totalorder %s16, 0
      %p37 = por %p35, %p36
      %p38 = scmp.ne.s32.totalorder %s24, %s25
      %p39 = scmp.eq.s32.totalorder %s17, 3
      %p40 = por %p38, %p39
      %p42 = scmp.ne.s32.totalorder %s25, %s41
      %p43 = scmp.eq.s32.totalorder %s17, 0
      %p44 = por %p42, %p43
      %s46 = sadd.s32 %s45, 1
      %p49 = scmp.eq.s32.totalorder %s11, 3
      %p50 = scmp.ne.s32.totalorder %s45, %s47
      %p51 = scmp.eq.s32.totalorder %s11, 0
      %p52 = por %p50, %p51
      %p53 = scmp.ne.s32.totalorder %s45, %s47
      %p54 = scmp.eq.s32.totalorder %s16, 3
      %p55 = por %p53, %p54
      %p56 = scmp.ne.s32.totalorder %s47, %s48
      %p57 = scmp.eq.s32.totalorder %s16, 0
      %p58 = por %p56, %p57
      %p59 = scmp.ne.s32.totalorder %s47, %s48
      %p60 = scmp.eq.s32.totalorder %s17, 3
      %p61 = por %p59, %p60
      %p63 = scmp.ne.s32.totalorder %s48, %s62
      %p64 = scmp.eq.s32.totalorder %s17, 0
      %p65 = por %p63, %p64
      %p66 = scmp.le.s32.totalorder 1, %s11
      %p67 = scmp.lt.s32.totalorder %s11, 5
      %p68 = pnand %p66, %p67
      %p69 = pneg %p68
      // Predicated region
      $region9: #{tpu_custom_call.1} parent=5 // pred_check
        _
      $region10: #{tpu_custom_call.1} parent=5 // pred_check_branch
        %71 = sbr.rel (%p68) target = $region12
      $region11: #{tpu_custom_call.1} parent=5 // pred_region
        %s72 = ssub.s32 %s11, 1
      $region12: #{tpu_custom_call.1} parent=5 // pred_fallthru
        _
      %p73 = scmp.lt.s32.totalorder %s11, 4
      // Predicated region
      $region13: #{tpu_custom_call.1} parent=5 // pred_check
        %p74 = pneg %p73
      $region14: #{tpu_custom_call.1} parent=5 // pred_check_branch
        %76 = sbr.rel (%p74) target = $region16
      $region15: #{tpu_custom_call.1} parent=5 // pred_region
        // Predicated region
        $region17: #{tpu_custom_call.1} parent=15 // pred_check
          %p77 = pneg %p31
        $region18: #{tpu_custom_call.1} parent=15 // pred_check_branch
          %79 = sbr.rel (%p77) target = $region20
        $region19: #{tpu_custom_call.1} parent=15 // pred_region
          %s80 = sand.u32 %s21, 1
          %s81 = scalar_lea.sflag [#allocation3], %s80
          %s82 = sand.u32 %s21, 1
          %s83 = smul.addr %s82, 48
          %s84 = scalar_lea.vmem [#allocation2], %s83
          %s85 = smul.u32 2, %s11
          %s87 = ssub.s32 768, 768
          %88 = vsyncadd %s81, %s87
          %s89 = smul.addr %s85, 3
          %s90 = smul.addr %s89, 128
          %s91 = scalar_lea.hbm %s0, %s90
          %s92 = sshll.u32 %s84, 4
          %s93 = int_to_ptr.vmem [resolvable:$true] %s92
          %98 = dma.hbm_to_vmem [thread:$0]  %s91, 768, %s93, %s81, 128, 128, 8
        $region20: #{tpu_custom_call.1} parent=15 // pred_fallthru
          _
      $region16: #{tpu_custom_call.1} parent=5 // pred_fallthru
        _
      %p99 = scmp.le.s32.totalorder 1, %s11
      %p100 = scmp.lt.s32.totalorder %s11, 5
      %p101 = pnand %p99, %p100
      %p102 = pneg %p101
      // Predicated region
      $region21: #{tpu_custom_call.1} parent=5 // pred_check
        _
      $region22: #{tpu_custom_call.1} parent=5 // pred_check_branch
        %104 = sbr.rel (%p101) target = $region24
      $region23: #{tpu_custom_call.1} parent=5 // pred_region
        %s105 = ssub.s32 %s11, 1
        %s106 = sand.u32 %s24, 1
        %s107 = scalar_lea.sflag [#allocation3], %s106
        %s108 = sand.u32 %s24, 1
        %s109 = smul.addr %s108, 48
        %s110 = scalar_lea.vmem [#allocation2], %s109
        // Predicated region
        $region25: #{tpu_custom_call.1} parent=23 // pred_check
          %p111 = pneg %p37
        $region26: #{tpu_custom_call.1} parent=23 // pred_check_branch
          %113 = sbr.rel (%p111) target = $region28
        $region27: #{tpu_custom_call.1} parent=23 // pred_region
          %114 = dma.done %s107, 768
        $region28: #{tpu_custom_call.1} parent=23 // pred_fallthru
          _
        %s115 = sand.u32 %s24, 1
        %s116 = scalar_lea.sflag [#allocation3], %s115
        %s117 = sand.u32 %s24, 1
        %s118 = smul.addr %s117, 48
        %s119 = scalar_lea.vmem [#allocation2], %s118
        %p120 = pneg %p37
        %p121 = pneg %p34
        %p122 = pneg %p58
        %p123 = pneg %p55
        %s124 = smul.u32 2, %s16
        %p125 = scmp.eq.s32.totalorder %s16, 0
        // Predicated region
        $region29: #{tpu_custom_call.1} parent=23 // pred_check
          %p126 = pneg %p125
        $region30: #{tpu_custom_call.1} parent=23 // pred_check_branch
          %128 = sbr.rel (%p126) target = $region32
        $region31: #{tpu_custom_call.1} parent=23 // pred_region
          %s129 = scalar_lea.smem [#allocation5], 0
          %130 = sst [smem:[%s129]] 0.0
        $region32: #{tpu_custom_call.1} parent=23 // pred_fallthru
          _
        %v131 = vld [vmem:[%s110 + $0x4] sm:$0xff]
        %v132 = vld [vmem:[%s110 + $0xc] sm:$0xff]
        %v133 = vld [vmem:[%s110 + $0x1c] sm:$0xff]
        %v134 = vld [vmem:[%s110 + $0x24] sm:$0xff]
        %v135 = vmul.f32 %v131, %v131
        %v136 = vmul.f32 %v132, %v132
        %v137 = vmul.f32 %v133, %v133
        %v138 = vmul.f32 %v134, %v134
        %v139 = vadd.f32 %v135, 1e-09
        %v140 = vadd.f32 %v136, 1e-09
        %v141 = vadd.f32 %v137, 1e-09
        %v142 = vadd.f32 %v138, 1e-09
        %v143 = vrsqrt.pop %v139
        %v144 = vmul.f32 %v139, %v143
        %vm145 = vcmp.eq.f32.partialorder %v139, inf
        %v146 = vsel %vm145, %v139, %v144
        %vm147 = vcmp.eq.f32.partialorder %v139, 0.0
        %v148 = vand.u32 %v139, 2147483648
        %v149 = vsel %vm147, %v148, %v146
        %v150 = vrsqrt.pop %v140
        %v151 = vmul.f32 %v140, %v150
        %vm152 = vcmp.eq.f32.partialorder %v140, inf
        %v153 = vsel %vm152, %v140, %v151
        %vm154 = vcmp.eq.f32.partialorder %v140, 0.0
        %v155 = vand.u32 %v140, 2147483648
        %v156 = vsel %vm154, %v155, %v153
        %v157 = vrsqrt.pop %v141
        %v158 = vmul.f32 %v141, %v157
        %vm159 = vcmp.eq.f32.partialorder %v141, inf
        %v160 = vsel %vm159, %v141, %v158
        %vm161 = vcmp.eq.f32.partialorder %v141, 0.0
        %v162 = vand.u32 %v141, 2147483648
        %v163 = vsel %vm161, %v162, %v160
        %v164 = vrsqrt.pop %v142
        %v165 = vmul.f32 %v142, %v164
        %vm166 = vcmp.eq.f32.partialorder %v142, inf
        %v167 = vsel %vm166, %v142, %v165
        %vm168 = vcmp.eq.f32.partialorder %v142, 0.0
        %v169 = vand.u32 %v142, 2147483648
        %v170 = vsel %vm168, %v169, %v167
        %175 = vrot.lane.b32.xlu0 %v149, 124
        %v176 = vpop.permute.xlu0 %175
        %177 = vrot.lane.b32.xlu0 %v156, 124
        %v178 = vpop.permute.xlu0 %177
        %179 = vrot.lane.b32.xlu0 %v163, 124
        %v180 = vpop.permute.xlu0 %179
        %181 = vrot.lane.b32.xlu0 %v170, 124
        %v182 = vpop.permute.xlu0 %181
        %vm187 = vcmask 130048
        %v188 = vsel %vm187, %v176, 0.0
        %v189 = vsel %vm187, %v178, 0.0
        %v190 = vadd.f32 %v188, %v189
        %v191 = vsel %vm187, %v180, 0.0
        %v192 = vadd.f32 %v190, %v191
        %v193 = vsel %vm187, %v182, 0.0
        %v194 = vadd.f32 %v192, %v193
        %195 = vadd.xlane.f32.xlu0 %v194
        %v196 = vpop.xlane.xlu0 %195
        %v197 = vrot.slane %v196, 4
        %v198 = vadd.f32 %v196, %v197
        %v199 = vrot.slane %v198, 2
        %v200 = vadd.f32 %v198, %v199
        %v201 = vrot.slane %v200, 1
        %v202 = vadd.f32 %v200, %v201
        %s203 = vtos %v202
        %s204 = smul.f32 %s203, 0.00048828125
        %v205 = vld [vmem:[%s110 + $0x3] sm:$0xff]
        %v206 = vld [vmem:[%s110 + $0xb] sm:$0xff]
        %v207 = vld [vmem:[%s110 + $0x1b] sm:$0xff]
        %v208 = vld [vmem:[%s110 + $0x23] sm:$0xff]
        %v209 = vmul.f32 %v205, 0.32781494
        %v210 = vmul.f32 %v206, 0.32781494
        %v211 = vmul.f32 %v207, 0.32781494
        %v212 = vmul.f32 %v208, 0.32781494
        %v213 = vmul.f32 %v131, 0.34437013
        %v214 = vmul.f32 %v132, 0.34437013
        %v215 = vmul.f32 %v133, 0.34437013
        %v216 = vmul.f32 %v134, 0.34437013
        %v217 = vadd.f32 %v209, %v213
        %v218 = vadd.f32 %v210, %v214
        %v219 = vadd.f32 %v211, %v215
        %v220 = vadd.f32 %v212, %v216
        %v221 = vld [vmem:[%s110 + $0x5] sm:$0xff]
        %v222 = vld [vmem:[%s110 + $0xd] sm:$0xff]
        %v223 = vld [vmem:[%s110 + $0x1d] sm:$0xff]
        %v224 = vld [vmem:[%s110 + $0x25] sm:$0xff]
        %v225 = vmul.f32 %v221, 0.32781494
        %v226 = vmul.f32 %v222, 0.32781494
        %v227 = vmul.f32 %v223, 0.32781494
        %v228 = vmul.f32 %v224, 0.32781494
        %v229 = vadd.f32 %v217, %v225
        %v230 = vadd.f32 %v218, %v226
        %v231 = vadd.f32 %v219, %v227
        %v232 = vadd.f32 %v220, %v228
        %v233 = vmul.f32 %v229, 0.32781494
        %v234 = vmul.f32 %v230, 0.32781494
        %v235 = vmul.f32 %v231, 0.32781494
        %v236 = vmul.f32 %v232, 0.32781494
        %v237 = vmul.f32 %v229, 0.34437013
        %v238 = vmul.f32 %v230, 0.34437013
        %v239 = vmul.f32 %v231, 0.34437013
        %v240 = vmul.f32 %v232, 0.34437013
        %245 = vrot.lane.b32.xlu0 %v237, 127
        %v246 = vpop.permute.xlu0 %245
        %247 = vrot.lane.b32.xlu0 %v238, 127
        %v248 = vpop.permute.xlu0 %247
        %249 = vrot.lane.b32.xlu0 %v239, 127
        %v250 = vpop.permute.xlu0 %249
        %251 = vrot.lane.b32.xlu0 %v240, 127
        %v252 = vpop.permute.xlu0 %251
        %v257 = vadd.f32 %v233, %v246
        %v258 = vadd.f32 %v234, %v248
        %v259 = vadd.f32 %v235, %v250
        %v260 = vadd.f32 %v236, %v252
        %265 = vrot.lane.b32.xlu0 %v233, 126
        %v266 = vpop.permute.xlu0 %265
        %267 = vrot.lane.b32.xlu0 %v234, 126
        %v268 = vpop.permute.xlu0 %267
        %269 = vrot.lane.b32.xlu0 %v235, 126
        %v270 = vpop.permute.xlu0 %269
        %271 = vrot.lane.b32.xlu0 %v236, 126
        %v272 = vpop.permute.xlu0 %271
        %v277 = vadd.f32 %v257, %v266
        %v278 = vadd.f32 %v258, %v268
        %v279 = vadd.f32 %v259, %v270
        %v280 = vadd.f32 %v260, %v272
        %v281 = vmul.f32 %v277, %v277
        %v282 = vmul.f32 %v278, %v278
        %v283 = vmul.f32 %v279, %v279
        %v284 = vmul.f32 %v280, %v280
        %v285 = vadd.f32 %v281, 1e-09
        %v286 = vadd.f32 %v282, 1e-09
        %v287 = vadd.f32 %v283, 1e-09
        %v288 = vadd.f32 %v284, 1e-09
        %v289 = vrsqrt.pop %v285
        %v290 = vmul.f32 %v285, %v289
        %vm291 = vcmp.eq.f32.partialorder %v285, inf
        %v292 = vsel %vm291, %v285, %v290
        %vm293 = vcmp.eq.f32.partialorder %v285, 0.0
        %v294 = vand.u32 %v285, 2147483648
        %v295 = vsel %vm293, %v294, %v292
        %v296 = vrsqrt.pop %v286
        %v297 = vmul.f32 %v286, %v296
        %vm298 = vcmp.eq.f32.partialorder %v286, inf
        %v299 = vsel %vm298, %v286, %v297
        %vm300 = vcmp.eq.f32.partialorder %v286, 0.0
        %v301 = vand.u32 %v286, 2147483648
        %v302 = vsel %vm300, %v301, %v299
        %v303 = vrsqrt.pop %v287
        %v304 = vmul.f32 %v287, %v303
        %vm305 = vcmp.eq.f32.partialorder %v287, inf
        %v306 = vsel %vm305, %v287, %v304
        %vm307 = vcmp.eq.f32.partialorder %v287, 0.0
        %v308 = vand.u32 %v287, 2147483648
        %v309 = vsel %vm307, %v308, %v306
        %v310 = vrsqrt.pop %v288
        %v311 = vmul.f32 %v288, %v310
        %vm312 = vcmp.eq.f32.partialorder %v288, inf
        %v313 = vsel %vm312, %v288, %v311
        %vm314 = vcmp.eq.f32.partialorder %v288, 0.0
        %v315 = vand.u32 %v288, 2147483648
        %v316 = vsel %vm314, %v315, %v313
        %321 = vrot.lane.b32.xlu0 %v295, 125
        %v322 = vpop.permute.xlu0 %321
        %323 = vrot.lane.b32.xlu0 %v302, 125
        %v324 = vpop.permute.xlu0 %323
        %325 = vrot.lane.b32.xlu0 %v309, 125
        %v326 = vpop.permute.xlu0 %325
        %327 = vrot.lane.b32.xlu0 %v316, 125
        %v328 = vpop.permute.xlu0 %327
        %v333 = vsel %vm187, %v322, 0.0
        %v334 = vsel %vm187, %v324, 0.0
        %v335 = vadd.f32 %v333, %v334
        %v336 = vsel %vm187, %v326, 0.0
        %v337 = vadd.f32 %v335, %v336
        %v338 = vsel %vm187, %v328, 0.0
        %v339 = vadd.f32 %v337, %v338
        %340 = vadd.xlane.f32.xlu0 %v339
        %v341 = vpop.xlane.xlu0 %340
        %v342 = vrot.slane %v341, 4
        %v343 = vadd.f32 %v341, %v342
        %v344 = vrot.slane %v343, 2
        %v345 = vadd.f32 %v343, %v344
        %v346 = vrot.slane %v345, 1
        %v347 = vadd.f32 %v345, %v346
        %s348 = vtos %v347
        %s349 = smul.f32 %s348, 0.00016276042
        %s350 = sadd.f32 %s204, %s349
        %v351 = vmul.f32 %v205, 0.32788354
        %v352 = vmul.f32 %v206, 0.32788354
        %v353 = vmul.f32 %v207, 0.32788354
        %v354 = vmul.f32 %v208, 0.32788354
        %v355 = vmul.f32 %v131, 0.3442329
        %v356 = vmul.f32 %v132, 0.3442329
        %v357 = vmul.f32 %v133, 0.3442329
        %v358 = vmul.f32 %v134, 0.3442329
        %v359 = vadd.f32 %v351, %v355
        %v360 = vadd.f32 %v352, %v356
        %v361 = vadd.f32 %v353, %v357
        %v362 = vadd.f32 %v354, %v358
        %v363 = vmul.f32 %v221, 0.32788354
        %v364 = vmul.f32 %v222, 0.32788354
        %v365 = vmul.f32 %v223, 0.32788354
        %v366 = vmul.f32 %v224, 0.32788354
        %v367 = vadd.f32 %v359, %v363
        %v368 = vadd.f32 %v360, %v364
        %v369 = vadd.f32 %v361, %v365
        %v370 = vadd.f32 %v362, %v366
        %v371 = vmul.f32 %v367, 0.32788354
        %v372 = vmul.f32 %v368, 0.32788354
        %v373 = vmul.f32 %v369, 0.32788354
        %v374 = vmul.f32 %v370, 0.32788354
        %v375 = vmul.f32 %v367, 0.3442329
        %v376 = vmul.f32 %v368, 0.3442329
        %v377 = vmul.f32 %v369, 0.3442329
        %v378 = vmul.f32 %v370, 0.3442329
        %383 = vrot.lane.b32.xlu0 %v375, 127
        %v384 = vpop.permute.xlu0 %383
        %385 = vrot.lane.b32.xlu0 %v376, 127
        %v386 = vpop.permute.xlu0 %385
        %387 = vrot.lane.b32.xlu0 %v377, 127
        %v388 = vpop.permute.xlu0 %387
        %389 = vrot.lane.b32.xlu0 %v378, 127
        %v390 = vpop.permute.xlu0 %389
        %v395 = vadd.f32 %v371, %v384
        %v396 = vadd.f32 %v372, %v386
        %v397 = vadd.f32 %v373, %v388
        %v398 = vadd.f32 %v374, %v390
        %403 = vrot.lane.b32.xlu0 %v371, 126
        %v404 = vpop.permute.xlu0 %403
        %405 = vrot.lane.b32.xlu0 %v372, 126
        %v406 = vpop.permute.xlu0 %405
        %407 = vrot.lane.b32.xlu0 %v373, 126
        %v408 = vpop.permute.xlu0 %407
        %409 = vrot.lane.b32.xlu0 %v374, 126
        %v410 = vpop.permute.xlu0 %409
        %v415 = vadd.f32 %v395, %v404
        %v416 = vadd.f32 %v396, %v406
        %v417 = vadd.f32 %v397, %v408
        %v418 = vadd.f32 %v398, %v410
        %v419 = vmul.f32 %v415, %v415
        %v420 = vmul.f32 %v416, %v416
        %v421 = vmul.f32 %v417, %v417
        %v422 = vmul.f32 %v418, %v418
        %v423 = vadd.f32 %v419, 1e-09
        %v424 = vadd.f32 %v420, 1e-09
        %v425 = vadd.f32 %v421, 1e-09
        %v426 = vadd.f32 %v422, 1e-09
        %v427 = vrsqrt.pop %v423
        %v428 = vmul.f32 %v423, %v427
        %vm429 = vcmp.eq.f32.partialorder %v423, inf
        %v430 = vsel %vm429, %v423, %v428
        %vm431 = vcmp.eq.f32.partialorder %v423, 0.0
        %v432 = vand.u32 %v423, 2147483648
        %v433 = vsel %vm431, %v432, %v430
        %v434 = vrsqrt.pop %v424
        %v435 = vmul.f32 %v424, %v434
        %vm436 = vcmp.eq.f32.partialorder %v424, inf
        %v437 = vsel %vm436, %v424, %v435
        %vm438 = vcmp.eq.f32.partialorder %v424, 0.0
        %v439 = vand.u32 %v424, 2147483648
        %v440 = vsel %vm438, %v439, %v437
        %v441 = vrsqrt.pop %v425
        %v442 = vmul.f32 %v425, %v441
        %vm443 = vcmp.eq.f32.partialorder %v425, inf
        %v444 = vsel %vm443, %v425, %v442
        %vm445 = vcmp.eq.f32.partialorder %v425, 0.0
        %v446 = vand.u32 %v425, 2147483648
        %v447 = vsel %vm445, %v446, %v444
        %v448 = vrsqrt.pop %v426
        %v449 = vmul.f32 %v426, %v448
        %vm450 = vcmp.eq.f32.partialorder %v426, inf
        %v451 = vsel %vm450, %v426, %v449
        %vm452 = vcmp.eq.f32.partialorder %v426, 0.0
        %v453 = vand.u32 %v426, 2147483648
        %v454 = vsel %vm452, %v453, %v451
        %459 = vrot.lane.b32.xlu0 %v433, 125
        %v460 = vpop.permute.xlu0 %459
        %461 = vrot.lane.b32.xlu0 %v440, 125
        %v462 = vpop.permute.xlu0 %461
        %463 = vrot.lane.b32.xlu0 %v447, 125
        %v464 = vpop.permute.xlu0 %463
        %465 = vrot.lane.b32.xlu0 %v454, 125
        %v466 = vpop.permute.xlu0 %465
        %v471 = vsel %vm187, %v460, 0.0
        %v472 = vsel %vm187, %v462, 0.0
        %v473 = vadd.f32 %v471, %v472
        %v474 = vsel %vm187, %v464, 0.0
        %v475 = vadd.f32 %v473, %v474
        %v476 = vsel %vm187, %v466, 0.0
        %v477 = vadd.f32 %v475, %v476
        %478 = vadd.xlane.f32.xlu0 %v477
        %v479 = vpop.xlane.xlu0 %478
        %v480 = vrot.slane %v479, 4
        %v481 = vadd.f32 %v479, %v480
        %v482 = vrot.slane %v481, 2
        %v483 = vadd.f32 %v481, %v482
        %v484 = vrot.slane %v483, 1
        %v485 = vadd.f32 %v483, %v484
        %s486 = vtos %v485
        %s487 = smul.f32 %s486, 0.00016276042
        %s488 = sadd.f32 %s350, %s487
        %v489 = vld [vmem:[%s110 + $0x2] sm:$0xff]
        %v490 = vld [vmem:[%s110 + $0xa] sm:$0xff]
        %v491 = vld [vmem:[%s110 + $0x1a] sm:$0xff]
        %v492 = vld [vmem:[%s110 + $0x22] sm:$0xff]
        %v493 = vmul.f32 %v489, 0.1813359
        %v494 = vmul.f32 %v490, 0.1813359
        %v495 = vmul.f32 %v491, 0.1813359
        %v496 = vmul.f32 %v492, 0.1813359
        %v497 = vmul.f32 %v205, 0.20905854
        %v498 = vmul.f32 %v206, 0.20905854
        %v499 = vmul.f32 %v207, 0.20905854
        %v500 = vmul.f32 %v208, 0.20905854
        %v501 = vadd.f32 %v493, %v497
        %v502 = vadd.f32 %v494, %v498
        %v503 = vadd.f32 %v495, %v499
        %v504 = vadd.f32 %v496, %v500
        %v505 = vmul.f32 %v131, 0.21921113
        %v506 = vmul.f32 %v132, 0.21921113
        %v507 = vmul.f32 %v133, 0.21921113
        %v508 = vmul.f32 %v134, 0.21921113
        %v509 = vadd.f32 %v501, %v505
        %v510 = vadd.f32 %v502, %v506
        %v511 = vadd.f32 %v503, %v507
        %v512 = vadd.f32 %v504, %v508
        %v513 = vmul.f32 %v221, 0.20905854
        %v514 = vmul.f32 %v222, 0.20905854
        %v515 = vmul.f32 %v223, 0.20905854
        %v516 = vmul.f32 %v224, 0.20905854
        %v517 = vadd.f32 %v509, %v513
        %v518 = vadd.f32 %v510, %v514
        %v519 = vadd.f32 %v511, %v515
        %v520 = vadd.f32 %v512, %v516
        %v521 = vld [vmem:[%s110 + $0x6] sm:$0xff]
        %v522 = vld [vmem:[%s110 + $0xe] sm:$0xff]
        %v523 = vld [vmem:[%s110 + $0x1e] sm:$0xff]
        %v524 = vld [vmem:[%s110 + $0x26] sm:$0xff]
        %v525 = vmul.f32 %v521, 0.1813359
        %v526 = vmul.f32 %v522, 0.1813359
        %v527 = vmul.f32 %v523, 0.1813359
        %v528 = vmul.f32 %v524, 0.1813359
        %v529 = vadd.f32 %v517, %v525
        %v530 = vadd.f32 %v518, %v526
        %v531 = vadd.f32 %v519, %v527
        %v532 = vadd.f32 %v520, %v528
        %v533 = vmul.f32 %v529, 0.1813359
        %v534 = vmul.f32 %v530, 0.1813359
        %v535 = vmul.f32 %v531, 0.1813359
        %v536 = vmul.f32 %v532, 0.1813359
        %v537 = vmul.f32 %v529, 0.20905854
        %v538 = vmul.f32 %v530, 0.20905854
        %v539 = vmul.f32 %v531, 0.20905854
        %v540 = vmul.f32 %v532, 0.20905854
        %545 = vrot.lane.b32.xlu0 %v537, 127
        %v546 = vpop.permute.xlu0 %545
        %547 = vrot.lane.b32.xlu0 %v538, 127
        %v548 = vpop.permute.xlu0 %547
        %549 = vrot.lane.b32.xlu0 %v539, 127
        %v550 = vpop.permute.xlu0 %549
        %551 = vrot.lane.b32.xlu0 %v540, 127
        %v552 = vpop.permute.xlu0 %551
        %v557 = vadd.f32 %v533, %v546
        %v558 = vadd.f32 %v534, %v548
        %v559 = vadd.f32 %v535, %v550
        %v560 = vadd.f32 %v536, %v552
        %v561 = vmul.f32 %v529, 0.21921113
        %v562 = vmul.f32 %v530, 0.21921113
        %v563 = vmul.f32 %v531, 0.21921113
        %v564 = vmul.f32 %v532, 0.21921113
        %569 = vrot.lane.b32.xlu0 %v561, 126
        %v570 = vpop.permute.xlu0 %569
        %571 = vrot.lane.b32.xlu0 %v562, 126
        %v572 = vpop.permute.xlu0 %571
        %573 = vrot.lane.b32.xlu0 %v563, 126
        %v574 = vpop.permute.xlu0 %573
        %575 = vrot.lane.b32.xlu0 %v564, 126
        %v576 = vpop.permute.xlu0 %575
        %v581 = vadd.f32 %v557, %v570
        %v582 = vadd.f32 %v558, %v572
        %v583 = vadd.f32 %v559, %v574
        %v584 = vadd.f32 %v560, %v576
        %585 = vrot.lane.b32.xlu0 %v537, 125
        %v586 = vpop.permute.xlu0 %585
        %587 = vrot.lane.b32.xlu0 %v538, 125
        %v588 = vpop.permute.xlu0 %587
        %589 = vrot.lane.b32.xlu0 %v539, 125
        %v590 = vpop.permute.xlu0 %589
        %591 = vrot.lane.b32.xlu0 %v540, 125
        %v592 = vpop.permute.xlu0 %591
        %v597 = vadd.f32 %v581, %v586
        %v598 = vadd.f32 %v582, %v588
        %v599 = vadd.f32 %v583, %v590
        %v600 = vadd.f32 %v584, %v592
        %605 = vrot.lane.b32.xlu0 %v533, 124
        %v606 = vpop.permute.xlu0 %605
        %607 = vrot.lane.b32.xlu0 %v534, 124
        %v608 = vpop.permute.xlu0 %607
        %609 = vrot.lane.b32.xlu0 %v535, 124
        %v610 = vpop.permute.xlu0 %609
        %611 = vrot.lane.b32.xlu0 %v536, 124
        %v612 = vpop.permute.xlu0 %611
        %v617 = vadd.f32 %v597, %v606
        %v618 = vadd.f32 %v598, %v608
        %v619 = vadd.f32 %v599, %v610
        %v620 = vadd.f32 %v600, %v612
        %v621 = vmul.f32 %v617, %v617
        %v622 = vmul.f32 %v618, %v618
        %v623 = vmul.f32 %v619, %v619
        %v624 = vmul.f32 %v620, %v620
        %v625 = vadd.f32 %v621, 1e-09
        %v626 = vadd.f32 %v622, 1e-09
        %v627 = vadd.f32 %v623, 1e-09
        %v628 = vadd.f32 %v624, 1e-09
        %v629 = vrsqrt.pop %v625
        %v630 = vmul.f32 %v625, %v629
        %vm631 = vcmp.eq.f32.partialorder %v625, inf
        %v632 = vsel %vm631, %v625, %v630
        %vm633 = vcmp.eq.f32.partialorder %v625, 0.0
        %v634 = vand.u32 %v625, 2147483648
        %v635 = vsel %vm633, %v634, %v632
        %v636 = vrsqrt.pop %v626
        %v637 = vmul.f32 %v626, %v636
        %vm638 = vcmp.eq.f32.partialorder %v626, inf
        %v639 = vsel %vm638, %v626, %v637
        %vm640 = vcmp.eq.f32.partialorder %v626, 0.0
        %v641 = vand.u32 %v626, 2147483648
        %v642 = vsel %vm640, %v641, %v639
        %v643 = vrsqrt.pop %v627
        %v644 = vmul.f32 %v627, %v643
        %vm645 = vcmp.eq.f32.partialorder %v627, inf
        %v646 = vsel %vm645, %v627, %v644
        %vm647 = vcmp.eq.f32.partialorder %v627, 0.0
        %v648 = vand.u32 %v627, 2147483648
        %v649 = vsel %vm647, %v648, %v646
        %v650 = vrsqrt.pop %v628
        %v651 = vmul.f32 %v628, %v650
        %vm652 = vcmp.eq.f32.partialorder %v628, inf
        %v653 = vsel %vm652, %v628, %v651
        %vm654 = vcmp.eq.f32.partialorder %v628, 0.0
        %v655 = vand.u32 %v628, 2147483648
        %v656 = vsel %vm654, %v655, %v653
        %661 = vrot.lane.b32.xlu0 %v635, 126
        %v662 = vpop.permute.xlu0 %661
        %663 = vrot.lane.b32.xlu0 %v642, 126
        %v664 = vpop.permute.xlu0 %663
        %665 = vrot.lane.b32.xlu0 %v649, 126
        %v666 = vpop.permute.xlu0 %665
        %667 = vrot.lane.b32.xlu0 %v656, 126
        %v668 = vpop.permute.xlu0 %667
        %v673 = vsel %vm187, %v662, 0.0
        %v674 = vsel %vm187, %v664, 0.0
        %v675 = vadd.f32 %v673, %v674
        %v676 = vsel %vm187, %v666, 0.0
        %v677 = vadd.f32 %v675, %v676
        %v678 = vsel %vm187, %v668, 0.0
        %v679 = vadd.f32 %v677, %v678
        %680 = vadd.xlane.f32.xlu0 %v679
        %v681 = vpop.xlane.xlu0 %680
        %v682 = vrot.slane %v681, 4
        %v683 = vadd.f32 %v681, %v682
        %v684 = vrot.slane %v683, 2
        %v685 = vadd.f32 %v683, %v684
        %v686 = vrot.slane %v685, 1
        %v687 = vadd.f32 %v685, %v686
        %s688 = vtos %v687
        %s689 = smul.f32 %s688, 0.00016276042
        %s690 = sadd.f32 %s488, %s689
        %s691 = sld [smem:[#allocation5]]
        %s692 = sadd.f32 %s691, %s690
        %s693 = scalar_lea.smem [#allocation5], 0
        %694 = sst [smem:[%s693]] %s692
        // Predicated region
        $region33: #{tpu_custom_call.1} parent=23 // pred_check
          %p695 = pneg %p55
        $region34: #{tpu_custom_call.1} parent=23 // pred_check_branch
          %697 = sbr.rel (%p695) target = $region36
        $region35: #{tpu_custom_call.1} parent=23 // pred_region
          %s699 = ssub.s32 16, 16
          %700 = vsyncadd [#allocation4], %s699
          %703 = dma.smem_to_hbm [#allocation5], 16, %s1, [#allocation4]
        $region36: #{tpu_custom_call.1} parent=23 // pred_fallthru
          _
        // Predicated region
        $region37: #{tpu_custom_call.1} parent=23 // pred_check
          %p704 = pneg %p55
        $region38: #{tpu_custom_call.1} parent=23 // pred_check_branch
          %706 = sbr.rel (%p704) target = $region40
        $region39: #{tpu_custom_call.1} parent=23 // pred_region
          %707 = dma.done [#allocation4], 16
        $region40: #{tpu_custom_call.1} parent=23 // pred_fallthru
          _
        %708 = sfence
      $region24: #{tpu_custom_call.1} parent=5 // pred_fallthru
        _
      %p709 = scmp.le.s32.totalorder 2, %s11
      // Predicated region
      $region41: #{tpu_custom_call.1} parent=5 // pred_check
        %p710 = pneg %p709
      $region42: #{tpu_custom_call.1} parent=5 // pred_check_branch
        %712 = sbr.rel (%p710) target = $region44
      $region43: #{tpu_custom_call.1} parent=5 // pred_region
        %s713 = ssub.s32 %s11, 2
      $region44: #{tpu_custom_call.1} parent=5 // pred_fallthru
        _
    $region6: #{tpu_custom_call.1} parent=1 // loop_footer
      %s15 = sadd.s32 1, %s11
    $region7: #{tpu_custom_call.1} parent=1 // loop_footer_branch
      %10 = sbr.rel target = $region3
    $region8: #{tpu_custom_call.1} parent=1 // loop_exit
      _
    %714 = vsyncpa [#allocation3], 1
    %s715 = scalar_lea.sflag [#allocation3], 1
    %716 = vsyncpa %s715, 1
    %717 = vsyncpa [#allocation4], 1
    %s718 = scalar_lea.sflag [#allocation4], 1
    %719 = vsyncpa %s718, 1

</llo_original>
